<compile_context>
chip_gen: v7x
topology: tpu7x:2x2x1
jax: 0.10.0
libtpu: 0.0.40
codegen_flags: <defaults>
</compile_context>

<pallas_src>
import functools

import jax
import jax.numpy as jnp
import numpy as np
from jax.experimental import pallas as pl
from jax.experimental.pallas import tpu as pltpu


def _conv_prelu_kernel(x_ref, w_ref, b_ref, a_ref, o_ref, patches_ref, *,
                       N, K, Cin, Wp, L):
    # x_ref:       (N, Cin, Hp*Wp + K-1)  zero-padded input, spatial dims flattened
    # w_ref:       (Cout, K*K*Cin)        weights in dense matmul layout ([kh][kw][ci])
    # b_ref:       (Cout, 1)              bias
    # a_ref:       (Cout, 1)              PReLU per-channel slope
    # o_ref:       (N, Cout, L)           L = H*Wp; valid outputs live at h*Wp + w (w < W)
    # patches_ref: (K*K*Cin, N*L)         VMEM scratch: im2col matrix (lane-dense)

    # --- im2col, built once: each conv tap is a contiguous lane-window of the
    #     flattened padded input (pure shifted slice, no reshape/relayout). ---
    for kh in range(K):
        for kw in range(K):
            t = kh * K + kw
            off = kh * Wp + kw
            for n in range(N):
                patches_ref[t * Cin:(t + 1) * Cin, n * L:(n + 1) * L] = (
                    x_ref[n, :, off:off + L]
                )

    # --- single fused matmul: contraction = K*K*Cin, M = N*L lanes (lane-dense). ---
    acc = jnp.dot(w_ref[...], patches_ref[...],
                  preferred_element_type=jnp.float32)          # (Cout, N*L) f32

    acc = acc + b_ref[...]                                     # bias, bcast over lanes
    alpha = a_ref[...]                                         # (Cout, 1)
    y = jnp.where(acc >= 0.0, acc, alpha * acc)                # PReLU

    # Lane-dense stores (288 lanes per row-block) straight into an NCHW-compatible layout.
    for n in range(N):
        o_ref[n] = y[:, n * L:(n + 1) * L].astype(o_ref.dtype)


def conv_prelu(x_nchw, weight, bias, alpha):
    """Forward of ConvPReLU.

    x_nchw: (N, Cin, H, W)   float32
    weight: (Cout, Cin, K, K) (PyTorch conv weight layout)
    bias:   (Cout,)
    alpha:  (Cout,)           PReLU per-channel slopes
    returns (N, Cout, H, W)
    """
    N, Cin, H, W = x_nchw.shape
    Cout, _, K, _ = weight.shape
    pad = K // 2
    Hp, Wp = H + 2 * pad, W + 2 * pad
    L = H * Wp  # per-image flat window length (valid outputs at h*Wp + w, w < W)

    # Cheap wrapper glue (all tiny / layout-free for these shapes):
    #  - spatial zero pad (kept in NCHW; no NHWC transpose)
    #  - flatten H,W (free row-major reshape) + K-1 trailing zeros so every tap's
    #    flat window of length L stays in bounds
    x_pad = jnp.pad(x_nchw, ((0, 0), (0, 0), (pad, pad), (pad, pad)))
    x_flat = x_pad.reshape(N, Cin, Hp * Wp)
    x_flat = jnp.pad(x_flat, ((0, 0), (0, 0), (0, K - 1))).astype(jnp.float32)

    # Dense matmul weight layout: w2d[co, (kh*K + kw)*Cin + ci] = weight[co, ci, kh, kw]
    w2d = jnp.transpose(weight, (0, 2, 3, 1)).reshape(Cout, K * K * Cin)
    w2d = w2d.astype(jnp.float32)
    b2 = bias.reshape(Cout, 1).astype(jnp.float32)
    a2 = alpha.reshape(Cout, 1).astype(jnp.float32)

    kernel = functools.partial(
        _conv_prelu_kernel, N=N, K=K, Cin=Cin, Wp=Wp, L=L
    )

    # Single invocation: no grid, whole arrays resident in VMEM.
    out_flat = pl.pallas_call(
        kernel,
        out_shape=jax.ShapeDtypeStruct((N, Cout, L), x_nchw.dtype),
        scratch_shapes=[pltpu.VMEM((K * K * Cin, N * L), jnp.float32)],
    )(x_flat, w2d, b2, a2)

    # (N, Cout, H*Wp) -> (N, Cout, H, Wp) is a free row-major reshape; drop the
    # Wp-W halo columns to land directly in NCHW (no output transpose pass).
    return out_flat.reshape(N, Cout, H, Wp)[:, :, :, :W]


def _reference(x_nchw, weight, bias, alpha):
    """Pure-JAX reference (matches torch Conv2d + PReLU semantics)."""
    y = jax.lax.conv_general_dilated(
        x_nchw, weight,
        window_strides=(1, 1),
        padding="SAME",
        dimension_numbers=("NCHW", "OIHW", "NCHW"),
    )
    y = y + bias.reshape(1, -1, 1, 1)
    a = alpha.reshape(1, -1, 1, 1)
    return jnp.where(y >= 0, y, a * y)


if __name__ == "__main__":
    # Module config: ConvPReLU(in_ch=4, out_ch=8, ksize=3)
    N, Cin, H, W = 2, 4, 16, 16
    Cout, K = 8, 3

    key = jax.random.PRNGKey(0)
    kx, kw, kb = jax.random.split(key, 3)

    x = jax.random.normal(kx, (N, Cin, H, W), dtype=jnp.float32)
    # Deterministic synthetic parameters (not a checkpoint load).
    weight = jax.random.normal(kw, (Cout, Cin, K, K), dtype=jnp.float32) * 0.1
    bias = jax.random.normal(kb, (Cout,), dtype=jnp.float32) * 0.1
    alpha = jnp.full((Cout,), 0.25, dtype=jnp.float32)  # PyTorch PReLU default init

    out = jax.block_until_ready(conv_prelu(x, weight, bias, alpha))
    ref = jax.block_until_ready(_reference(x, weight, bias, alpha))

    np.testing.assert_allclose(np.asarray(out), np.asarray(ref), atol=1e-4, rtol=1e-4)
    print("KERNEL_OK")
</pallas_src>

<mosaic_0001>
module attributes {stable_mosaic.version = 11 : i64} {
  func.func @_conv_prelu_kernel(%arg0: memref<2x4x326xf32, #tpu.memory_space<vmem>>, %arg1: memref<8x36xf32, #tpu.memory_space<vmem>>, %arg2: memref<8x1xf32, #tpu.memory_space<vmem>>, %arg3: memref<8x1xf32, #tpu.memory_space<vmem>>, %arg4: memref<2x8x288xf32, #tpu.memory_space<vmem>>, %arg5: memref<36x576xf32, #tpu.memory_space<vmem>>) attributes {dimension_semantics = [], scalar_prefetch = 0 : i64, scratch_operands = 1 : i64, tpu.core_type = #tpu.core_type<tc>} {
    %c0 = arith.constant 0 : index
    %c0_0 = arith.constant 0 : index
    %c0_1 = arith.constant 0 : index
    %0 = vector.load %arg0[%c0, %c0_0, %c0_1] : memref<2x4x326xf32, #tpu.memory_space<vmem>>, vector<1x4x288xf32>
    %1 = vector.shape_cast %0 : vector<1x4x288xf32> to vector<4x288xf32>
    %c0_2 = arith.constant 0 : index
    %c0_3 = arith.constant 0 : index
    %2 = vector.load %arg5[%c0_2, %c0_3] : memref<36x576xf32, #tpu.memory_space<vmem>>, vector<4x288xf32>
    tpu.vector_store %arg5[%c0_2, %c0_3], %1 {strides = array<i32>} : memref<36x576xf32, #tpu.memory_space<vmem>>, vector<4x288xf32>,
    %c1 = arith.constant 1 : index
    %c0_4 = arith.constant 0 : index
    %c0_5 = arith.constant 0 : index
    %3 = vector.load %arg0[%c1, %c0_4, %c0_5] : memref<2x4x326xf32, #tpu.memory_space<vmem>>, vector<1x4x288xf32>
    %4 = vector.shape_cast %3 : vector<1x4x288xf32> to vector<4x288xf32>
    %c0_6 = arith.constant 0 : index
    %c288 = arith.constant 288 : index
    %5 = vector.load %arg5[%c0_6, %c288] : memref<36x576xf32, #tpu.memory_space<vmem>>, vector<4x288xf32>
    tpu.vector_store %arg5[%c0_6, %c288], %4 {strides = array<i32>} : memref<36x576xf32, #tpu.memory_space<vmem>>, vector<4x288xf32>,
    %c0_7 = arith.constant 0 : index
    %c0_8 = arith.constant 0 : index
    %c1_9 = arith.constant 1 : index
    %6 = vector.load %arg0[%c0_7, %c0_8, %c1_9] : memref<2x4x326xf32, #tpu.memory_space<vmem>>, vector<1x4x288xf32>
    %7 = vector.shape_cast %6 : vector<1x4x288xf32> to vector<4x288xf32>
    %c4 = arith.constant 4 : index
    %c0_10 = arith.constant 0 : index
    %8 = vector.load %arg5[%c4, %c0_10] : memref<36x576xf32, #tpu.memory_space<vmem>>, vector<4x288xf32>
    tpu.vector_store %arg5[%c4, %c0_10], %7 {strides = array<i32>} : memref<36x576xf32, #tpu.memory_space<vmem>>, vector<4x288xf32>,
    %c1_11 = arith.constant 1 : index
    %c0_12 = arith.constant 0 : index
    %c1_13 = arith.constant 1 : index
    %9 = vector.load %arg0[%c1_11, %c0_12, %c1_13] : memref<2x4x326xf32, #tpu.memory_space<vmem>>, vector<1x4x288xf32>
    %10 = vector.shape_cast %9 : vector<1x4x288xf32> to vector<4x288xf32>
    %c4_14 = arith.constant 4 : index
    %c288_15 = arith.constant 288 : index
    %11 = vector.load %arg5[%c4_14, %c288_15] : memref<36x576xf32, #tpu.memory_space<vmem>>, vector<4x288xf32>
    tpu.vector_store %arg5[%c4_14, %c288_15], %10 {strides = array<i32>} : memref<36x576xf32, #tpu.memory_space<vmem>>, vector<4x288xf32>,
    %c0_16 = arith.constant 0 : index
    %c0_17 = arith.constant 0 : index
    %c2 = arith.constant 2 : index
    %12 = vector.load %arg0[%c0_16, %c0_17, %c2] : memref<2x4x326xf32, #tpu.memory_space<vmem>>, vector<1x4x288xf32>
    %13 = vector.shape_cast %12 : vector<1x4x288xf32> to vector<4x288xf32>
    %c8 = arith.constant 8 : index
    %c0_18 = arith.constant 0 : index
    %14 = vector.load %arg5[%c8, %c0_18] : memref<36x576xf32, #tpu.memory_space<vmem>>, vector<4x288xf32>
    tpu.vector_store %arg5[%c8, %c0_18], %13 {strides = array<i32>} : memref<36x576xf32, #tpu.memory_space<vmem>>, vector<4x288xf32>,
    %c1_19 = arith.constant 1 : index
    %c0_20 = arith.constant 0 : index
    %c2_21 = arith.constant 2 : index
    %15 = vector.load %arg0[%c1_19, %c0_20, %c2_21] : memref<2x4x326xf32, #tpu.memory_space<vmem>>, vector<1x4x288xf32>
    %16 = vector.shape_cast %15 : vector<1x4x288xf32> to vector<4x288xf32>
    %c8_22 = arith.constant 8 : index
    %c288_23 = arith.constant 288 : index
    %17 = vector.load %arg5[%c8_22, %c288_23] : memref<36x576xf32, #tpu.memory_space<vmem>>, vector<4x288xf32>
    tpu.vector_store %arg5[%c8_22, %c288_23], %16 {strides = array<i32>} : memref<36x576xf32, #tpu.memory_space<vmem>>, vector<4x288xf32>,
    %c0_24 = arith.constant 0 : index
    %c0_25 = arith.constant 0 : index
    %c18 = arith.constant 18 : index
    %18 = vector.load %arg0[%c0_24, %c0_25, %c18] : memref<2x4x326xf32, #tpu.memory_space<vmem>>, vector<1x4x288xf32>
    %19 = vector.shape_cast %18 : vector<1x4x288xf32> to vector<4x288xf32>
    %c12 = arith.constant 12 : index
    %c0_26 = arith.constant 0 : index
    %20 = vector.load %arg5[%c12, %c0_26] : memref<36x576xf32, #tpu.memory_space<vmem>>, vector<4x288xf32>
    tpu.vector_store %arg5[%c12, %c0_26], %19 {strides = array<i32>} : memref<36x576xf32, #tpu.memory_space<vmem>>, vector<4x288xf32>,
    %c1_27 = arith.constant 1 : index
    %c0_28 = arith.constant 0 : index
    %c18_29 = arith.constant 18 : index
    %21 = vector.load %arg0[%c1_27, %c0_28, %c18_29] : memref<2x4x326xf32, #tpu.memory_space<vmem>>, vector<1x4x288xf32>
    %22 = vector.shape_cast %21 : vector<1x4x288xf32> to vector<4x288xf32>
    %c12_30 = arith.constant 12 : index
    %c288_31 = arith.constant 288 : index
    %23 = vector.load %arg5[%c12_30, %c288_31] : memref<36x576xf32, #tpu.memory_space<vmem>>, vector<4x288xf32>
    tpu.vector_store %arg5[%c12_30, %c288_31], %22 {strides = array<i32>} : memref<36x576xf32, #tpu.memory_space<vmem>>, vector<4x288xf32>,
    %c0_32 = arith.constant 0 : index
    %c0_33 = arith.constant 0 : index
    %c19 = arith.constant 19 : index
    %24 = vector.load %arg0[%c0_32, %c0_33, %c19] : memref<2x4x326xf32, #tpu.memory_space<vmem>>, vector<1x4x288xf32>
    %25 = vector.shape_cast %24 : vector<1x4x288xf32> to vector<4x288xf32>
    %c16 = arith.constant 16 : index
    %c0_34 = arith.constant 0 : index
    %26 = vector.load %arg5[%c16, %c0_34] : memref<36x576xf32, #tpu.memory_space<vmem>>, vector<4x288xf32>
    tpu.vector_store %arg5[%c16, %c0_34], %25 {strides = array<i32>} : memref<36x576xf32, #tpu.memory_space<vmem>>, vector<4x288xf32>,
    %c1_35 = arith.constant 1 : index
    %c0_36 = arith.constant 0 : index
    %c19_37 = arith.constant 19 : index
    %27 = vector.load %arg0[%c1_35, %c0_36, %c19_37] : memref<2x4x326xf32, #tpu.memory_space<vmem>>, vector<1x4x288xf32>
    %28 = vector.shape_cast %27 : vector<1x4x288xf32> to vector<4x288xf32>
    %c16_38 = arith.constant 16 : index
    %c288_39 = arith.constant 288 : index
    %29 = vector.load %arg5[%c16_38, %c288_39] : memref<36x576xf32, #tpu.memory_space<vmem>>, vector<4x288xf32>
    tpu.vector_store %arg5[%c16_38, %c288_39], %28 {strides = array<i32>} : memref<36x576xf32, #tpu.memory_space<vmem>>, vector<4x288xf32>,
    %c0_40 = arith.constant 0 : index
    %c0_41 = arith.constant 0 : index
    %c20 = arith.constant 20 : index
    %30 = vector.load %arg0[%c0_40, %c0_41, %c20] : memref<2x4x326xf32, #tpu.memory_space<vmem>>, vector<1x4x288xf32>
    %31 = vector.shape_cast %30 : vector<1x4x288xf32> to vector<4x288xf32>
    %c20_42 = arith.constant 20 : index
    %c0_43 = arith.constant 0 : index
    %32 = vector.load %arg5[%c20_42, %c0_43] : memref<36x576xf32, #tpu.memory_space<vmem>>, vector<4x288xf32>
    tpu.vector_store %arg5[%c20_42, %c0_43], %31 {strides = array<i32>} : memref<36x576xf32, #tpu.memory_space<vmem>>, vector<4x288xf32>,
    %c1_44 = arith.constant 1 : index
    %c0_45 = arith.constant 0 : index
    %c20_46 = arith.constant 20 : index
    %33 = vector.load %arg0[%c1_44, %c0_45, %c20_46] : memref<2x4x326xf32, #tpu.memory_space<vmem>>, vector<1x4x288xf32>
    %34 = vector.shape_cast %33 : vector<1x4x288xf32> to vector<4x288xf32>
    %c20_47 = arith.constant 20 : index
    %c288_48 = arith.constant 288 : index
    %35 = vector.load %arg5[%c20_47, %c288_48] : memref<36x576xf32, #tpu.memory_space<vmem>>, vector<4x288xf32>
    tpu.vector_store %arg5[%c20_47, %c288_48], %34 {strides = array<i32>} : memref<36x576xf32, #tpu.memory_space<vmem>>, vector<4x288xf32>,
    %c0_49 = arith.constant 0 : index
    %c0_50 = arith.constant 0 : index
    %c36 = arith.constant 36 : index
    %36 = vector.load %arg0[%c0_49, %c0_50, %c36] : memref<2x4x326xf32, #tpu.memory_space<vmem>>, vector<1x4x288xf32>
    %37 = vector.shape_cast %36 : vector<1x4x288xf32> to vector<4x288xf32>
    %c24 = arith.constant 24 : index
    %c0_51 = arith.constant 0 : index
    %38 = vector.load %arg5[%c24, %c0_51] : memref<36x576xf32, #tpu.memory_space<vmem>>, vector<4x288xf32>
    tpu.vector_store %arg5[%c24, %c0_51], %37 {strides = array<i32>} : memref<36x576xf32, #tpu.memory_space<vmem>>, vector<4x288xf32>,
    %c1_52 = arith.constant 1 : index
    %c0_53 = arith.constant 0 : index
    %c36_54 = arith.constant 36 : index
    %39 = vector.load %arg0[%c1_52, %c0_53, %c36_54] : memref<2x4x326xf32, #tpu.memory_space<vmem>>, vector<1x4x288xf32>
    %40 = vector.shape_cast %39 : vector<1x4x288xf32> to vector<4x288xf32>
    %c24_55 = arith.constant 24 : index
    %c288_56 = arith.constant 288 : index
    %41 = vector.load %arg5[%c24_55, %c288_56] : memref<36x576xf32, #tpu.memory_space<vmem>>, vector<4x288xf32>
    tpu.vector_store %arg5[%c24_55, %c288_56], %40 {strides = array<i32>} : memref<36x576xf32, #tpu.memory_space<vmem>>, vector<4x288xf32>,
    %c0_57 = arith.constant 0 : index
    %c0_58 = arith.constant 0 : index
    %c37 = arith.constant 37 : index
    %42 = vector.load %arg0[%c0_57, %c0_58, %c37] : memref<2x4x326xf32, #tpu.memory_space<vmem>>, vector<1x4x288xf32>
    %43 = vector.shape_cast %42 : vector<1x4x288xf32> to vector<4x288xf32>
    %c28 = arith.constant 28 : index
    %c0_59 = arith.constant 0 : index
    %44 = vector.load %arg5[%c28, %c0_59] : memref<36x576xf32, #tpu.memory_space<vmem>>, vector<4x288xf32>
    tpu.vector_store %arg5[%c28, %c0_59], %43 {strides = array<i32>} : memref<36x576xf32, #tpu.memory_space<vmem>>, vector<4x288xf32>,
    %c1_60 = arith.constant 1 : index
    %c0_61 = arith.constant 0 : index
    %c37_62 = arith.constant 37 : index
    %45 = vector.load %arg0[%c1_60, %c0_61, %c37_62] : memref<2x4x326xf32, #tpu.memory_space<vmem>>, vector<1x4x288xf32>
    %46 = vector.shape_cast %45 : vector<1x4x288xf32> to vector<4x288xf32>
    %c28_63 = arith.constant 28 : index
    %c288_64 = arith.constant 288 : index
    %47 = vector.load %arg5[%c28_63, %c288_64] : memref<36x576xf32, #tpu.memory_space<vmem>>, vector<4x288xf32>
    tpu.vector_store %arg5[%c28_63, %c288_64], %46 {strides = array<i32>} : memref<36x576xf32, #tpu.memory_space<vmem>>, vector<4x288xf32>,
    %c0_65 = arith.constant 0 : index
    %c0_66 = arith.constant 0 : index
    %c38 = arith.constant 38 : index
    %48 = vector.load %arg0[%c0_65, %c0_66, %c38] : memref<2x4x326xf32, #tpu.memory_space<vmem>>, vector<1x4x288xf32>
    %49 = vector.shape_cast %48 : vector<1x4x288xf32> to vector<4x288xf32>
    %c32 = arith.constant 32 : index
    %c0_67 = arith.constant 0 : index
    %50 = vector.load %arg5[%c32, %c0_67] : memref<36x576xf32, #tpu.memory_space<vmem>>, vector<4x288xf32>
    tpu.vector_store %arg5[%c32, %c0_67], %49 {strides = array<i32>} : memref<36x576xf32, #tpu.memory_space<vmem>>, vector<4x288xf32>,
    %c1_68 = arith.constant 1 : index
    %c0_69 = arith.constant 0 : index
    %c38_70 = arith.constant 38 : index
    %51 = vector.load %arg0[%c1_68, %c0_69, %c38_70] : memref<2x4x326xf32, #tpu.memory_space<vmem>>, vector<1x4x288xf32>
    %52 = vector.shape_cast %51 : vector<1x4x288xf32> to vector<4x288xf32>
    %c32_71 = arith.constant 32 : index
    %c288_72 = arith.constant 288 : index
    %53 = vector.load %arg5[%c32_71, %c288_72] : memref<36x576xf32, #tpu.memory_space<vmem>>, vector<4x288xf32>
    tpu.vector_store %arg5[%c32_71, %c288_72], %52 {strides = array<i32>} : memref<36x576xf32, #tpu.memory_space<vmem>>, vector<4x288xf32>,
    %c0_73 = arith.constant 0 : index
    %c0_74 = arith.constant 0 : index
    %54 = vector.load %arg1[%c0_73, %c0_74] : memref<8x36xf32, #tpu.memory_space<vmem>>, vector<8x36xf32>
    %c0_75 = arith.constant 0 : index
    %c0_76 = arith.constant 0 : index
    %55 = vector.load %arg5[%c0_75, %c0_76] : memref<36x576xf32, #tpu.memory_space<vmem>>, vector<36x576xf32>
    %cst = arith.constant dense<0.000000e+00> : vector<8x576xf32>
    %56 = tpu.matmul %54, %55, %cst {dimension_numbers = #tpu.dot_dimension_numbers<[1], [0], [0], [1], [0, 0, 1, 1], [], []>} : vector<8x36xf32>, vector<36x576xf32>, vector<8x576xf32> -> vector<8x576xf32>
    %c0_77 = arith.constant 0 : index
    %c0_78 = arith.constant 0 : index
    %57 = vector.load %arg2[%c0_77, %c0_78] : memref<8x1xf32, #tpu.memory_space<vmem>>, vector<8x1xf32>
    %58 = vector.broadcast %57 : vector<8x1xf32> to vector<8x576xf32>
    %59 = arith.addf %56, %58 : vector<8x576xf32>
    %c0_79 = arith.constant 0 : index
    %c0_80 = arith.constant 0 : index
    %60 = vector.load %arg3[%c0_79, %c0_80] : memref<8x1xf32, #tpu.memory_space<vmem>>, vector<8x1xf32>
    %cst_81 = arith.constant 0.000000e+00 : f32
    %61 = vector.broadcast %cst_81 : f32 to vector<8x576xf32>
    %62 = arith.cmpf oge, %59, %61 : vector<8x576xf32>
    %63 = vector.broadcast %60 : vector<8x1xf32> to vector<8x576xf32>
    %64 = arith.mulf %63, %59 : vector<8x576xf32>
    %65 = arith.select %62, %59, %64 : vector<8x576xi1>, vector<8x576xf32>
    %66 = vector.extract_strided_slice %65 {offsets = [0, 0], sizes = [8, 288], strides = [1, 1]} : vector<8x576xf32> to vector<8x288xf32>
    %c0_82 = arith.constant 0 : index
    %c0_83 = arith.constant 0 : index
    %c0_84 = arith.constant 0 : index
    %67 = vector.load %arg4[%c0_82, %c0_83, %c0_84] : memref<2x8x288xf32, #tpu.memory_space<vmem>>, vector<1x8x288xf32>
    %68 = vector.shape_cast %67 : vector<1x8x288xf32> to vector<8x288xf32>
    %69 = vector.shape_cast %66 : vector<8x288xf32> to vector<1x8x288xf32>
    tpu.vector_store %arg4[%c0_82, %c0_83, %c0_84], %69 {strides = array<i32>} : memref<2x8x288xf32, #tpu.memory_space<vmem>>, vector<1x8x288xf32>,
    %70 = vector.extract_strided_slice %65 {offsets = [0, 288], sizes = [8, 288], strides = [1, 1]} : vector<8x576xf32> to vector<8x288xf32>
    %c1_85 = arith.constant 1 : index
    %c0_86 = arith.constant 0 : index
    %c0_87 = arith.constant 0 : index
    %71 = vector.load %arg4[%c1_85, %c0_86, %c0_87] : memref<2x8x288xf32, #tpu.memory_space<vmem>>, vector<1x8x288xf32>
    %72 = vector.shape_cast %71 : vector<1x8x288xf32> to vector<8x288xf32>
    %73 = vector.shape_cast %70 : vector<8x288xf32> to vector<1x8x288xf32>
    tpu.vector_store %arg4[%c1_85, %c0_86, %c0_87], %73 {strides = array<i32>} : memref<2x8x288xf32, #tpu.memory_space<vmem>>, vector<1x8x288xf32>,
    return
  }
}

</mosaic_0001>

<llo_original>
// kernel: tpu_custom_call.1
$region0: #{tpu_custom_call.1}
  #allocation0 [shape = 'u32[]', space=smem, size = 0x4, offset = 0x4, fixed_abs, tag = 'smem constant byte address 0x4 - core index']
  #allocation1 [shape = 'u32[144,128]{1,0:T(1,128)}', space=vmem, size = 0x12000, scoped, tag = 'internal scratch']
  #allocation2 [shape = 'f32[36,576]{1,0:T(8,128)}', space=vmem, size = 0x19000, scoped, tag = 'scratch operand']
  %s0 = inlined_call_operand.hbm [shape: f32[2,4,326], index: 0, kind: input, shape index: {}]
  %s1 = inlined_call_operand.vmem [shape: f32[8,36], index: 1, kind: input, shape index: {}]
  %s2 = inlined_call_operand.vmem [shape: f32[8,1], index: 2, kind: input, shape index: {}]
  %s3 = inlined_call_operand.vmem [shape: f32[8,1], index: 3, kind: input, shape index: {}]
  %s4 = inlined_call_operand.hbm [shape: f32[2,8,288], index: 4, kind: output, shape index: {}]
  %s5 = sld [smem:[#allocation0]]
  $region30: #{tpu_custom_call.1} parent=0
    _
  %s7 = ssub.s32 1, %s5
  %s8 = scalar_select 0, %s7, %s5
  $region1: #{tpu_custom_call.1} parent=0
    #allocation3 [shape = 'u8[12288]{0}', space=vmem, size = 0x3000, scoped, tag = 'input window, operand 0, single buffered']
    #allocation4 [shape = 's32[1]{0}', space=sflag, size = 0x4, scoped, tag = 'scoped memory for tpu_custom_call.1']
    #allocation5 [shape = 's32[1]{0}', space=sflag, size = 0x4, scoped, tag = 'scoped memory for tpu_custom_call.1']
    #allocation6 [shape = 'u8[24576]{0}', space=vmem, size = 0x6000, scoped, tag = 'output window, operand 0, single buffered']
    %9 = vsyncpa [#allocation4], 0
    %10 = vsyncpa [#allocation5], 0
    // Predicated region
    $region2: #{tpu_custom_call.1} parent=1 // pred_check
      _
    $region3: #{tpu_custom_call.1} parent=1 // pred_check_branch
      %12 = sbr.rel (0) target = $region5
    $region4: #{tpu_custom_call.1} parent=1 // pred_region
      %s14 = ssub.s32 384, 384
      %15 = vsyncadd [#allocation4], %s14
      %s16 = sshll.u32 [#allocation3], 4
      %s17 = int_to_ptr.vmem [resolvable:$true] %s16
      %22 = dma.hbm_to_vmem [thread:$0]  %s0, 384, %s17, [#allocation4], 192, 192, 12
    $region5: #{tpu_custom_call.1} parent=1 // pred_fallthru
      _
    // Predicated region
    $region6: #{tpu_custom_call.1} parent=1 // pred_check
      _
    $region7: #{tpu_custom_call.1} parent=1 // pred_check_branch
      %24 = sbr.rel (0) target = $region9
    $region8: #{tpu_custom_call.1} parent=1 // pred_region
      _
    $region9: #{tpu_custom_call.1} parent=1 // pred_fallthru
      _
    // Predicated region
    $region10: #{tpu_custom_call.1} parent=1 // pred_check
      _
    $region11: #{tpu_custom_call.1} parent=1 // pred_check_branch
      %26 = sbr.rel (0) target = $region13
    $region12: #{tpu_custom_call.1} parent=1 // pred_region
      _
    $region13: #{tpu_custom_call.1} parent=1 // pred_fallthru
      _
    // Predicated region
    $region14: #{tpu_custom_call.1} parent=1 // pred_check
      _
    $region15: #{tpu_custom_call.1} parent=1 // pred_check_branch
      %28 = sbr.rel (0) target = $region17
    $region16: #{tpu_custom_call.1} parent=1 // pred_region
      _
    $region17: #{tpu_custom_call.1} parent=1 // pred_fallthru
      _
    // Predicated region
    $region18: #{tpu_custom_call.1} parent=1 // pred_check
      _
    $region19: #{tpu_custom_call.1} parent=1 // pred_check_branch
      %30 = sbr.rel (0) target = $region21
    $region20: #{tpu_custom_call.1} parent=1 // pred_region
      %31 = dma.done [#allocation4], 384
    $region21: #{tpu_custom_call.1} parent=1 // pred_fallthru
      _
    %v32 = vld [vmem:[#allocation3] sm:$0xff]
    %v33 = vld [vmem:[#allocation3 + $0x8] sm:$0xf]
    %v35 = vcombine.high %v32, %v32
    %37 = vst [vmem:[#allocation2] sm:$0xf] %v32
    %38 = vst [vmem:[#allocation2 + $0x8] sm:$0xf] %v35
    %vm39 = vcmask 257024
    %40 = vst.msk [vmem:[#allocation2 + $0x10] sm:$0xf] %vm39, %v33
    %s41 = scalar_lea.vmem [#allocation3], 12
    %v42 = vld [vmem:[%s41] sm:$0xff]
    %v43 = vld [vmem:[%s41 + $0x8] sm:$0xf]
    %v46 = vcombine.high %v42, %v42
    %47 = vrot.lane.b32.xlu0 %v42, 32
    %v48 = vpop.permute.xlu0 %47
    %49 = vrot.lane.b32.xlu0 %v46, 32
    %v50 = vpop.permute.xlu0 %49
    %51 = vrot.lane.b32.xlu0 %v43, 32
    %v52 = vpop.permute.xlu0 %51
    %vm53 = vcmask 261120
    %v54 = vsel %vm53, %v48, %v50
    %v55 = vsel %vm53, %v50, %v52
    %vm59 = vcmask 1043712
    %60 = vst.msk [vmem:[#allocation2 + $0x10] sm:$0xf] %vm59, %v48
    %61 = vst [vmem:[#allocation2 + $0x18] sm:$0xf] %v54
    %vm62 = vcmask 519168
    %63 = vst.msk [vmem:[#allocation2 + $0x20] sm:$0xf] %vm62, %v55
    %v64 = vld [vmem:[#allocation3] sm:$0xff]
    %v65 = vld [vmem:[#allocation3 + $0x8] sm:$0xf]
    %v68 = vcombine.low %v64, %v64
    %v69 = vcombine.low %v65, %v65
    %70 = vrot.lane.b32.xlu0 %v68, 127
    %v71 = vpop.permute.xlu0 %70
    %72 = vrot.lane.b32.xlu0 %v64, 127
    %v73 = vpop.permute.xlu0 %72
    %74 = vrot.lane.b32.xlu0 %v69, 127
    %v75 = vpop.permute.xlu0 %74
    %vm76 = vcmask 1039360
    %v77 = vsel %vm76, %v71, %v73
    %v78 = vsel %vm76, %v73, %v75
    %82 = vst [vmem:[#allocation2] sm:$0xf0] %v77
    %83 = vst [vmem:[#allocation2 + $0x8] sm:$0xf0] %v78
    %vm84 = vcmask 261124
    %85 = vst.msk [vmem:[#allocation2 + $0x10] sm:$0xf0] %vm84, %v75
    %v86 = vld [vmem:[%s41] sm:$0xff]
    %v87 = vld [vmem:[%s41 + $0x8] sm:$0xf]
    %v90 = vcombine.low %v86, %v86
    %v91 = vcombine.low %v87, %v87
    %92 = vrot.lane.b32.xlu0 %v90, 31
    %v93 = vpop.permute.xlu0 %92
    %94 = vrot.lane.b32.xlu0 %v86, 31
    %v95 = vpop.permute.xlu0 %94
    %96 = vrot.lane.b32.xlu0 %v91, 31
    %v97 = vpop.permute.xlu0 %96
    %vm98 = vcmask 252928
    %v99 = vsel %vm98, %v93, %v95
    %v100 = vsel %vm98, %v95, %v97
    %vm104 = vcmask 1047812
    %105 = vst.msk [vmem:[#allocation2 + $0x10] sm:$0xf0] %vm104, %v93
    %106 = vst [vmem:[#allocation2 + $0x18] sm:$0xf0] %v99
    %vm107 = vcmask 523268
    %108 = vst.msk [vmem:[#allocation2 + $0x20] sm:$0xf0] %vm107, %v100
    %v109 = vld [vmem:[#allocation3] sm:$0xff]
    %v110 = vld [vmem:[#allocation3 + $0x8] sm:$0xf]
    %v113 = vcombine.high %v109, %v109
    %114 = vrot.lane.b32.xlu0 %v109, 126
    %v115 = vpop.permute.xlu0 %114
    %116 = vrot.lane.b32.xlu0 %v113, 126
    %v117 = vpop.permute.xlu0 %116
    %118 = vrot.lane.b32.xlu0 %v110, 126
    %v119 = vpop.permute.xlu0 %118
    %vm120 = vcmask 1031168
    %v121 = vsel %vm120, %v115, %v117
    %v122 = vsel %vm120, %v117, %v119
    %126 = vst [vmem:[#allocation2 + $0x28] sm:$0xf] %v121
    %127 = vst [vmem:[#allocation2 + $0x30] sm:$0xf] %v122
    %128 = vst.msk [vmem:[#allocation2 + $0x38] sm:$0xf] %vm39, %v119
    %v129 = vld [vmem:[%s41] sm:$0xff]
    %v130 = vld [vmem:[%s41 + $0x8] sm:$0xf]
    %v133 = vcombine.high %v129, %v129
    %134 = vrot.lane.b32.xlu0 %v129, 30
    %v135 = vpop.permute.xlu0 %134
    %136 = vrot.lane.b32.xlu0 %v133, 30
    %v137 = vpop.permute.xlu0 %136
    %138 = vrot.lane.b32.xlu0 %v130, 30
    %v139 = vpop.permute.xlu0 %138
    %vm140 = vcmask 244736
    %v141 = vsel %vm140, %v135, %v137
    %v142 = vsel %vm140, %v137, %v139
    %146 = vst.msk [vmem:[#allocation2 + $0x38] sm:$0xf] %vm59, %v135
    %147 = vst [vmem:[#allocation2 + $0x40] sm:$0xf] %v141
    %148 = vst.msk [vmem:[#allocation2 + $0x48] sm:$0xf] %vm62, %v142
    %v149 = vld [vmem:[#allocation3] sm:$0xff]
    %v150 = vld [vmem:[#allocation3 + $0x8] sm:$0xf]
    %v153 = vcombine.low %v149, %v149
    %v154 = vcombine.low %v150, %v150
    %155 = vrot.lane.b32.xlu0 %v153, 110
    %v156 = vpop.permute.xlu0 %155
    %157 = vrot.lane.b32.xlu0 %v149, 110
    %v158 = vpop.permute.xlu0 %157
    %159 = vrot.lane.b32.xlu0 %v154, 110
    %v160 = vpop.permute.xlu0 %159
    %vm161 = vcmask 900096
    %v162 = vsel %vm161, %v156, %v158
    %v163 = vsel %vm161, %v158, %v160
    %167 = vst [vmem:[#allocation2 + $0x28] sm:$0xf0] %v162
    %168 = vst [vmem:[#allocation2 + $0x30] sm:$0xf0] %v163
    %169 = vst.msk [vmem:[#allocation2 + $0x38] sm:$0xf0] %vm84, %v160
    %v170 = vld [vmem:[%s41] sm:$0xff]
    %v171 = vld [vmem:[%s41 + $0x8] sm:$0xf]
    %v174 = vcombine.low %v170, %v170
    %v175 = vcombine.low %v171, %v171
    %176 = vrot.lane.b32.xlu0 %v174, 14
    %v177 = vpop.permute.xlu0 %176
    %178 = vrot.lane.b32.xlu0 %v170, 14
    %v179 = vpop.permute.xlu0 %178
    %180 = vrot.lane.b32.xlu0 %v175, 14
    %v181 = vpop.permute.xlu0 %180
    %vm182 = vcmask 113664
    %v183 = vsel %vm182, %v177, %v179
    %v184 = vsel %vm182, %v179, %v181
    %188 = vst.msk [vmem:[#allocation2 + $0x38] sm:$0xf0] %vm104, %v177
    %189 = vst [vmem:[#allocation2 + $0x40] sm:$0xf0] %v183
    %190 = vst.msk [vmem:[#allocation2 + $0x48] sm:$0xf0] %vm107, %v184
    %v191 = vld [vmem:[#allocation3] sm:$0xff]
    %v192 = vld [vmem:[#allocation3 + $0x8] sm:$0xf]
    %v195 = vcombine.high %v191, %v191
    %196 = vrot.lane.b32.xlu0 %v191, 109
    %v197 = vpop.permute.xlu0 %196
    %198 = vrot.lane.b32.xlu0 %v195, 109
    %v199 = vpop.permute.xlu0 %198
    %200 = vrot.lane.b32.xlu0 %v192, 109
    %v201 = vpop.permute.xlu0 %200
    %vm202 = vcmask 891904
    %v203 = vsel %vm202, %v197, %v199
    %v204 = vsel %vm202, %v199, %v201
    %208 = vst [vmem:[#allocation2 + $0x50] sm:$0xf] %v203
    %209 = vst [vmem:[#allocation2 + $0x58] sm:$0xf] %v204
    %210 = vst.msk [vmem:[#allocation2 + $0x60] sm:$0xf] %vm39, %v201
    %v211 = vld [vmem:[%s41] sm:$0xff]
    %v212 = vld [vmem:[%s41 + $0x8] sm:$0xf]
    %v215 = vcombine.high %v211, %v211
    %216 = vrot.lane.b32.xlu0 %v211, 13
    %v217 = vpop.permute.xlu0 %216
    %218 = vrot.lane.b32.xlu0 %v215, 13
    %v219 = vpop.permute.xlu0 %218
    %220 = vrot.lane.b32.xlu0 %v212, 13
    %v221 = vpop.permute.xlu0 %220
    %vm222 = vcmask 105472
    %v223 = vsel %vm222, %v217, %v219
    %v224 = vsel %vm222, %v219, %v221
    %228 = vst.msk [vmem:[#allocation2 + $0x60] sm:$0xf] %vm59, %v217
    %229 = vst [vmem:[#allocation2 + $0x68] sm:$0xf] %v223
    %230 = vst.msk [vmem:[#allocation2 + $0x70] sm:$0xf] %vm62, %v224
    %v231 = vld [vmem:[#allocation3] sm:$0xff]
    %v232 = vld [vmem:[#allocation3 + $0x8] sm:$0xf]
    %v235 = vcombine.low %v231, %v231
    %v236 = vcombine.low %v232, %v232
    %237 = vrot.lane.b32.xlu0 %v235, 108
    %v238 = vpop.permute.xlu0 %237
    %239 = vrot.lane.b32.xlu0 %v231, 108
    %v240 = vpop.permute.xlu0 %239
    %241 = vrot.lane.b32.xlu0 %v236, 108
    %v242 = vpop.permute.xlu0 %241
    %vm243 = vcmask 883712
    %v244 = vsel %vm243, %v238, %v240
    %v245 = vsel %vm243, %v240, %v242
    %249 = vst [vmem:[#allocation2 + $0x50] sm:$0xf0] %v244
    %250 = vst [vmem:[#allocation2 + $0x58] sm:$0xf0] %v245
    %251 = vst.msk [vmem:[#allocation2 + $0x60] sm:$0xf0] %vm84, %v242
    %v252 = vld [vmem:[%s41] sm:$0xff]
    %v253 = vld [vmem:[%s41 + $0x8] sm:$0xf]
    %v256 = vcombine.low %v252, %v252
    %v257 = vcombine.low %v253, %v253
    %258 = vrot.lane.b32.xlu0 %v256, 12
    %v259 = vpop.permute.xlu0 %258
    %260 = vrot.lane.b32.xlu0 %v252, 12
    %v261 = vpop.permute.xlu0 %260
    %262 = vrot.lane.b32.xlu0 %v257, 12
    %v263 = vpop.permute.xlu0 %262
    %vm264 = vcmask 97280
    %v265 = vsel %vm264, %v259, %v261
    %v266 = vsel %vm264, %v261, %v263
    %270 = vst.msk [vmem:[#allocation2 + $0x60] sm:$0xf0] %vm104, %v259
    %271 = vst [vmem:[#allocation2 + $0x68] sm:$0xf0] %v265
    %272 = vst.msk [vmem:[#allocation2 + $0x70] sm:$0xf0] %vm107, %v266
    %v273 = vld [vmem:[#allocation3] sm:$0xff]
    %v274 = vld [vmem:[#allocation3 + $0x8] sm:$0xf]
    %v277 = vcombine.high %v273, %v273
    %278 = vrot.lane.b32.xlu0 %v273, 92
    %v279 = vpop.permute.xlu0 %278
    %280 = vrot.lane.b32.xlu0 %v277, 92
    %v281 = vpop.permute.xlu0 %280
    %282 = vrot.lane.b32.xlu0 %v274, 92
    %v283 = vpop.permute.xlu0 %282
    %vm284 = vcmask 752640
    %v285 = vsel %vm284, %v279, %v281
    %v286 = vsel %vm284, %v281, %v283
    %290 = vst [vmem:[#allocation2 + $0x78] sm:$0xf] %v285
    %291 = vst [vmem:[#allocation2 + $0x80] sm:$0xf] %v286
    %292 = vst.msk [vmem:[#allocation2 + $0x88] sm:$0xf] %vm39, %v283
    %v293 = vld [vmem:[%s41] sm:$0xff]
    %v294 = vld [vmem:[%s41 + $0x8] sm:$0xf]
    %v297 = vcombine.high %v293, %v293
    %298 = vrot.lane.b32.xlu0 %v293, 124
    %v299 = vpop.permute.xlu0 %298
    %300 = vrot.lane.b32.xlu0 %v297, 124
    %v301 = vpop.permute.xlu0 %300
    %302 = vrot.lane.b32.xlu0 %v294, 124
    %v303 = vpop.permute.xlu0 %302
    %vm304 = vcmask 1014784
    %v305 = vsel %vm304, %v299, %v301
    %v306 = vsel %vm304, %v301, %v303
    %310 = vst.msk [vmem:[#allocation2 + $0x88] sm:$0xf] %vm59, %v305
    %311 = vst [vmem:[#allocation2 + $0x90] sm:$0xf] %v306
    %312 = vst.msk [vmem:[#allocation2 + $0x98] sm:$0xf] %vm62, %v303
    %v313 = vld [vmem:[#allocation3] sm:$0xff]
    %v314 = vld [vmem:[#allocation3 + $0x8] sm:$0xf]
    %v317 = vcombine.low %v313, %v313
    %v318 = vcombine.low %v314, %v314
    %319 = vrot.lane.b32.xlu0 %v317, 91
    %v320 = vpop.permute.xlu0 %319
    %321 = vrot.lane.b32.xlu0 %v313, 91
    %v322 = vpop.permute.xlu0 %321
    %323 = vrot.lane.b32.xlu0 %v318, 91
    %v324 = vpop.permute.xlu0 %323
    %vm325 = vcmask 744448
    %v326 = vsel %vm325, %v320, %v322
    %v327 = vsel %vm325, %v322, %v324
    %331 = vst [vmem:[#allocation2 + $0x78] sm:$0xf0] %v326
    %332 = vst [vmem:[#allocation2 + $0x80] sm:$0xf0] %v327
    %333 = vst.msk [vmem:[#allocation2 + $0x88] sm:$0xf0] %vm84, %v324
    %v334 = vld [vmem:[%s41] sm:$0xff]
    %v335 = vld [vmem:[%s41 + $0x8] sm:$0xf]
    %v338 = vcombine.low %v334, %v334
    %v339 = vcombine.low %v335, %v335
    %340 = vrot.lane.b32.xlu0 %v338, 123
    %v341 = vpop.permute.xlu0 %340
    %342 = vrot.lane.b32.xlu0 %v334, 123
    %v343 = vpop.permute.xlu0 %342
    %344 = vrot.lane.b32.xlu0 %v339, 123
    %v345 = vpop.permute.xlu0 %344
    %vm346 = vcmask 1006592
    %v347 = vsel %vm346, %v341, %v343
    %v348 = vsel %vm346, %v343, %v345
    %352 = vst.msk [vmem:[#allocation2 + $0x88] sm:$0xf0] %vm104, %v347
    %353 = vst [vmem:[#allocation2 + $0x90] sm:$0xf0] %v348
    %354 = vst.msk [vmem:[#allocation2 + $0x98] sm:$0xf0] %vm107, %v345
    %v355 = vld [vmem:[#allocation3] sm:$0xff]
    %v356 = vld [vmem:[#allocation3 + $0x8] sm:$0xf]
    %v359 = vcombine.high %v355, %v355
    %360 = vrot.lane.b32.xlu0 %v355, 90
    %v361 = vpop.permute.xlu0 %360
    %362 = vrot.lane.b32.xlu0 %v359, 90
    %v363 = vpop.permute.xlu0 %362
    %364 = vrot.lane.b32.xlu0 %v356, 90
    %v365 = vpop.permute.xlu0 %364
    %vm366 = vcmask 736256
    %v367 = vsel %vm366, %v361, %v363
    %v368 = vsel %vm366, %v363, %v365
    %372 = vst [vmem:[#allocation2 + $0xa0] sm:$0xf] %v367
    %373 = vst [vmem:[#allocation2 + $0xa8] sm:$0xf] %v368
    %374 = vst.msk [vmem:[#allocation2 + $0xb0] sm:$0xf] %vm39, %v365
    %v375 = vld [vmem:[%s41] sm:$0xff]
    %v376 = vld [vmem:[%s41 + $0x8] sm:$0xf]
    %v379 = vcombine.high %v375, %v375
    %380 = vrot.lane.b32.xlu0 %v375, 122
    %v381 = vpop.permute.xlu0 %380
    %382 = vrot.lane.b32.xlu0 %v379, 122
    %v383 = vpop.permute.xlu0 %382
    %384 = vrot.lane.b32.xlu0 %v376, 122
    %v385 = vpop.permute.xlu0 %384
    %vm386 = vcmask 998400
    %v387 = vsel %vm386, %v381, %v383
    %v388 = vsel %vm386, %v383, %v385
    %392 = vst.msk [vmem:[#allocation2 + $0xb0] sm:$0xf] %vm59, %v387
    %393 = vst [vmem:[#allocation2 + $0xb8] sm:$0xf] %v388
    %394 = vst.msk [vmem:[#allocation2 + $0xc0] sm:$0xf] %vm62, %v385
    %v395 = vld [vmem:[%s1] sm:$0xff]
    %v396 = vld [vmem:[#allocation2] sm:$0xff]
    %v397 = vld [vmem:[#allocation2 + $0x8] sm:$0xff]
    %v398 = vld [vmem:[#allocation2 + $0x10] sm:$0xff]
    %v399 = vld [vmem:[#allocation2 + $0x18] sm:$0xff]
    %v400 = vld [vmem:[#allocation2 + $0x20] sm:$0xff]
    %v401 = vld [vmem:[#allocation2 + $0x28] sm:$0xff]
    %v402 = vld [vmem:[#allocation2 + $0x30] sm:$0xff]
    %v403 = vld [vmem:[#allocation2 + $0x38] sm:$0xff]
    %v404 = vld [vmem:[#allocation2 + $0x40] sm:$0xff]
    %v405 = vld [vmem:[#allocation2 + $0x48] sm:$0xff]
    %v406 = vld [vmem:[#allocation2 + $0x50] sm:$0xff]
    %v407 = vld [vmem:[#allocation2 + $0x58] sm:$0xff]
    %v408 = vld [vmem:[#allocation2 + $0x60] sm:$0xff]
    %v409 = vld [vmem:[#allocation2 + $0x68] sm:$0xff]
    %v410 = vld [vmem:[#allocation2 + $0x70] sm:$0xff]
    %v411 = vld [vmem:[#allocation2 + $0x78] sm:$0xff]
    %v412 = vld [vmem:[#allocation2 + $0x80] sm:$0xff]
    %v413 = vld [vmem:[#allocation2 + $0x88] sm:$0xff]
    %v414 = vld [vmem:[#allocation2 + $0x90] sm:$0xff]
    %v415 = vld [vmem:[#allocation2 + $0x98] sm:$0xff]
    %v416 = vld [vmem:[#allocation2 + $0xa0] sm:$0xf]
    %v417 = vld [vmem:[#allocation2 + $0xa8] sm:$0xf]
    %v418 = vld [vmem:[#allocation2 + $0xb0] sm:$0xf]
    %v419 = vld [vmem:[#allocation2 + $0xb8] sm:$0xf]
    %v420 = vld [vmem:[#allocation2 + $0xc0] sm:$0xf]
    %v421 = vld [vmem:[%s2] sm:$0xff]
    %423 = vset.pattern.permute.xlu0 0
    %424 = vperm.xlu0 %423, %v421
    %v425 = vpop.permute.xlu0 %424
    %vm427 = vcmask 293888
    %v429 = vsel %vm427, %v395, 0
    %vm431 = vcmask 1043456
    %v433 = vsel %vm431, %v416, 0
    %v436 = vsel %vm431, %v417, 0
    %v439 = vsel %vm431, %v418, 0
    %v442 = vsel %vm431, %v419, 0
    %v445 = vsel %vm431, %v420, 0
    %447 = vmatprep.subr.mxu0 %v397
    %448 = vmatpush1.msra.mxu0 %v396
    %449 = vmatprep.subr.mxu0 %v402
    %450 = vmatpush1.msra.mxu0 %v401
    %451 = vmatprep.subr.mxu0 %v407
    %452 = vmatpush1.msra.mxu0 %v406
    %453 = vmatprep.subr.mxu0 %v412
    %454 = vmatpush1.msra.mxu0 %v411
    %455 = vmatprep.subr.mxu0 %v436
    %456 = vmatpush1.msra.mxu0 %v433
    %457 = vmatprep.subr.mxu0 0.0
    %458 = vmatpush1.msra.mxu0 0.0
    %459 = vmatprep.subr.mxu0 0.0
    %460 = vmatpush1.msra.mxu0 0.0
    %461 = vmatprep.subr.mxu0 0.0
    %462 = vmatpush1.msra.mxu0 0.0
    %463 = vmatprep.subr.mxu0 0.0
    %464 = vmatpush1.msra.mxu0 0.0
    %465 = vmatprep.subr.mxu0 0.0
    %466 = vmatpush1.msra.mxu0 0.0
    %467 = vmatprep.subr.mxu0 0.0
    %468 = vmatpush1.msra.mxu0 0.0
    %469 = vmatprep.subr.mxu0 0.0
    %470 = vmatpush1.msra.mxu0 0.0
    %471 = vmatprep.subr.mxu0 0.0
    %472 = vmatpush1.msra.mxu0 0.0
    %473 = vmatprep.subr.mxu0 0.0
    %474 = vmatpush1.msra.mxu0 0.0
    %475 = vmatprep.subr.mxu0 0.0
    %476 = vmatpush1.msra.mxu0 0.0
    %477 = vmatprep.subr.mxu0 0.0
    %478 = vmatpush1.msra.mxu0 0.0
    %479 = vmatprep.subr.mxu0 0.0
    %480 = vmatpush1.msra.mxu0 0.0
    %481 = vmatprep.subr.mxu0 0.0
    %482 = vmatpush1.msra.mxu0 0.0
    %483 = vmatprep.subr.mxu0 0.0
    %484 = vmatpush1.msra.mxu0 0.0
    %485 = vmatprep.subr.mxu0 0.0
    %486 = vmatpush1.msra.mxu0 0.0
    %487 = vmatprep.subr.mxu0 0.0
    %488 = vmatpush1.msra.mxu0 0.0
    %489 = vmatprep.subr.mxu0 0.0
    %490 = vmatpush1.msra.mxu0 0.0
    %491 = vmatprep.subr.mxu0 0.0
    %492 = vmatpush1.msra.mxu0 0.0
    %493 = vmatprep.subr.mxu0 0.0
    %494 = vmatpush1.msra.mxu0 0.0
    %495 = vmatprep.subr.mxu0 0.0
    %496 = vmatpush1.msra.mxu0 0.0
    %497 = vmatprep.subr.mxu0 0.0
    %498 = vmatpush1.msra.mxu0 0.0
    %499 = vmatprep.subr.mxu0 0.0
    %500 = vmatpush1.msra.mxu0 0.0
    %501 = vmatprep.subr.mxu0 0.0
    %502 = vmatpush1.msra.mxu0 0.0
    %503 = vmatprep.subr.mxu0 0.0
    %504 = vmatpush1.msra.mxu0 0.0
    %505 = vmatprep.subr.mxu0 0.0
    %506 = vmatpush1.msra.mxu0 0.0
    %507 = vmatprep.subr.mxu0 0.0
    %508 = vmatpush1.msra.mxu0 0.0
    %509 = vmatprep.subr.mxu0 0.0
    %510 = vmatpush1.msra.mxu0 0.0
    %511 = vmatprep.mubr.f32.mxu0 0.0
    %512 = vmatmul.mubr.f32.gmra.mrb[0].mxu0 %v429
    %v513 = vpop.f32.mrb[0].mxu0
    %v514 = vadd.f32 %v425, %v513
    %v515 = vpop.f32.mrb[0].mxu0
    %v516 = vadd.f32 %v425, %v515
    %517 = vdwg.mxu0
    %518 = vmatprep.subr.mxu0 %v399
    %519 = vmatpush1.msra.mxu0 %v398
    %520 = vmatprep.subr.mxu0 %v404
    %521 = vmatpush1.msra.mxu0 %v403
    %522 = vmatprep.subr.mxu0 %v409
    %523 = vmatpush1.msra.mxu0 %v408
    %524 = vmatprep.subr.mxu0 %v414
    %525 = vmatpush1.msra.mxu0 %v413
    %526 = vmatprep.subr.mxu0 %v442
    %527 = vmatpush1.msra.mxu0 %v439
    %528 = vmatprep.subr.mxu0 0.0
    %529 = vmatpush1.msra.mxu0 0.0
    %530 = vmatprep.subr.mxu0 0.0
    %531 = vmatpush1.msra.mxu0 0.0
    %532 = vmatprep.subr.mxu0 0.0
    %533 = vmatpush1.msra.mxu0 0.0
    %534 = vmatprep.subr.mxu0 0.0
    %535 = vmatpush1.msra.mxu0 0.0
    %536 = vmatprep.subr.mxu0 0.0
    %537 = vmatpush1.msra.mxu0 0.0
    %538 = vmatprep.subr.mxu0 0.0
    %539 = vmatpush1.msra.mxu0 0.0
    %540 = vmatprep.subr.mxu0 0.0
    %541 = vmatpush1.msra.mxu0 0.0
    %542 = vmatprep.subr.mxu0 0.0
    %543 = vmatpush1.msra.mxu0 0.0
    %544 = vmatprep.subr.mxu0 0.0
    %545 = vmatpush1.msra.mxu0 0.0
    %546 = vmatprep.subr.mxu0 0.0
    %547 = vmatpush1.msra.mxu0 0.0
    %548 = vmatprep.subr.mxu0 0.0
    %549 = vmatpush1.msra.mxu0 0.0
    %550 = vmatprep.subr.mxu0 0.0
    %551 = vmatpush1.msra.mxu0 0.0
    %552 = vmatprep.subr.mxu0 0.0
    %553 = vmatpush1.msra.mxu0 0.0
    %554 = vmatprep.subr.mxu0 0.0
    %555 = vmatpush1.msra.mxu0 0.0
    %556 = vmatprep.subr.mxu0 0.0
    %557 = vmatpush1.msra.mxu0 0.0
    %558 = vmatprep.subr.mxu0 0.0
    %559 = vmatpush1.msra.mxu0 0.0
    %560 = vmatprep.subr.mxu0 0.0
    %561 = vmatpush1.msra.mxu0 0.0
    %562 = vmatprep.subr.mxu0 0.0
    %563 = vmatpush1.msra.mxu0 0.0
    %564 = vmatprep.subr.mxu0 0.0
    %565 = vmatpush1.msra.mxu0 0.0
    %566 = vmatprep.subr.mxu0 0.0
    %567 = vmatpush1.msra.mxu0 0.0
    %568 = vmatprep.subr.mxu0 0.0
    %569 = vmatpush1.msra.mxu0 0.0
    %570 = vmatprep.subr.mxu0 0.0
    %571 = vmatpush1.msra.mxu0 0.0
    %572 = vmatprep.subr.mxu0 0.0
    %573 = vmatpush1.msra.mxu0 0.0
    %574 = vmatprep.subr.mxu0 0.0
    %575 = vmatpush1.msra.mxu0 0.0
    %576 = vmatprep.subr.mxu0 0.0
    %577 = vmatpush1.msra.mxu0 0.0
    %578 = vmatprep.subr.mxu0 0.0
    %579 = vmatpush1.msra.mxu0 0.0
    %580 = vmatprep.subr.mxu0 0.0
    %581 = vmatpush1.msra.mxu0 0.0
    %582 = vmatprep.mubr.f32.mxu0 0.0
    %583 = vmatmul.mubr.f32.gmra.mrb[0].mxu0 %v429
    %v584 = vpop.f32.mrb[0].mxu0
    %v585 = vadd.f32 %v425, %v584
    %v586 = vpop.f32.mrb[0].mxu0
    %v587 = vadd.f32 %v425, %v586
    %588 = vdwg.mxu0
    %589 = vmatprep.subr.mxu0 0.0
    %590 = vmatpush1.msra.mxu0 %v400
    %591 = vmatprep.subr.mxu0 0.0
    %592 = vmatpush1.msra.mxu0 %v405
    %593 = vmatprep.subr.mxu0 0.0
    %594 = vmatpush1.msra.mxu0 %v410
    %595 = vmatprep.subr.mxu0 0.0
    %596 = vmatpush1.msra.mxu0 %v415
    %597 = vmatprep.subr.mxu0 0.0
    %598 = vmatpush1.msra.mxu0 %v445
    %599 = vmatprep.subr.mxu0 0.0
    %600 = vmatpush1.msra.mxu0 0.0
    %601 = vmatprep.subr.mxu0 0.0
    %602 = vmatpush1.msra.mxu0 0.0
    %603 = vmatprep.subr.mxu0 0.0
    %604 = vmatpush1.msra.mxu0 0.0
    %605 = vmatprep.subr.mxu0 0.0
    %606 = vmatpush1.msra.mxu0 0.0
    %607 = vmatprep.subr.mxu0 0.0
    %608 = vmatpush1.msra.mxu0 0.0
    %609 = vmatprep.subr.mxu0 0.0
    %610 = vmatpush1.msra.mxu0 0.0
    %611 = vmatprep.subr.mxu0 0.0
    %612 = vmatpush1.msra.mxu0 0.0
    %613 = vmatprep.subr.mxu0 0.0
    %614 = vmatpush1.msra.mxu0 0.0
    %615 = vmatprep.subr.mxu0 0.0
    %616 = vmatpush1.msra.mxu0 0.0
    %617 = vmatprep.subr.mxu0 0.0
    %618 = vmatpush1.msra.mxu0 0.0
    %619 = vmatprep.subr.mxu0 0.0
    %620 = vmatpush1.msra.mxu0 0.0
    %621 = vmatprep.subr.mxu0 0.0
    %622 = vmatpush1.msra.mxu0 0.0
    %623 = vmatprep.subr.mxu0 0.0
    %624 = vmatpush1.msra.mxu0 0.0
    %625 = vmatprep.subr.mxu0 0.0
    %626 = vmatpush1.msra.mxu0 0.0
    %627 = vmatprep.subr.mxu0 0.0
    %628 = vmatpush1.msra.mxu0 0.0
    %629 = vmatprep.subr.mxu0 0.0
    %630 = vmatpush1.msra.mxu0 0.0
    %631 = vmatprep.subr.mxu0 0.0
    %632 = vmatpush1.msra.mxu0 0.0
    %633 = vmatprep.subr.mxu0 0.0
    %634 = vmatpush1.msra.mxu0 0.0
    %635 = vmatprep.subr.mxu0 0.0
    %636 = vmatpush1.msra.mxu0 0.0
    %637 = vmatprep.subr.mxu0 0.0
    %638 = vmatpush1.msra.mxu0 0.0
    %639 = vmatprep.subr.mxu0 0.0
    %640 = vmatpush1.msra.mxu0 0.0
    %641 = vmatprep.subr.mxu0 0.0
    %642 = vmatpush1.msra.mxu0 0.0
    %643 = vmatprep.subr.mxu0 0.0
    %644 = vmatpush1.msra.mxu0 0.0
    %645 = vmatprep.subr.mxu0 0.0
    %646 = vmatpush1.msra.mxu0 0.0
    %647 = vmatprep.subr.mxu0 0.0
    %648 = vmatpush1.msra.mxu0 0.0
    %649 = vmatprep.subr.mxu0 0.0
    %650 = vmatpush1.msra.mxu0 0.0
    %651 = vmatprep.subr.mxu0 0.0
    %652 = vmatpush1.msra.mxu0 0.0
    %653 = vmatprep.mubr.f32.mxu0 0.0
    %654 = vmatmul.mubr.f32.gmra.mrb[0].mxu0 %v429
    %v655 = vpop.f32.mrb[0].mxu0
    %v656 = vadd.f32 %v425, %v655
    %v657 = vpop.f32.mrb[0].mxu0
    %658 = vdwg.mxu0
    %v659 = vld [vmem:[%s3] sm:$0xff]
    %vm660 = vcmp.ge.f32.partialorder %v514, 0.0
    %vm661 = vcmp.ge.f32.partialorder %v516, 0.0
    %vm662 = vcmp.ge.f32.partialorder %v585, 0.0
    %vm663 = vcmp.ge.f32.partialorder %v587, 0.0
    %vm664 = vcmp.ge.f32.partialorder %v656, 0.0
    %666 = vset.pattern.permute.xlu0 0
    %667 = vperm.xlu0 %666, %v659
    %v668 = vpop.permute.xlu0 %667
    %v670 = vmul.f32 %v668, %v514
    %v671 = vmul.f32 %v668, %v516
    %v672 = vmul.f32 %v668, %v585
    %v673 = vmul.f32 %v668, %v587
    %v674 = vmul.f32 %v668, %v656
    %v675 = vsel %vm660, %v514, %v670
    %v676 = vsel %vm661, %v516, %v671
    %v677 = vsel %vm662, %v585, %v672
    %v678 = vsel %vm663, %v587, %v673
    %v679 = vsel %vm664, %v656, %v674
    %680 = vst [vmem:[#allocation6] sm:$0xff] %v675
    %681 = vst [vmem:[#allocation6 + $0x8] sm:$0xff] %v676
    %682 = vst.msk [vmem:[#allocation6 + $0x10] sm:$0xff] %vm53, %v677
    %686 = vrot.lane.b32.xlu0 %v677, 96
    %v687 = vpop.permute.xlu0 %686
    %688 = vrot.lane.b32.xlu0 %v678, 96
    %v689 = vpop.permute.xlu0 %688
    %690 = vrot.lane.b32.xlu0 %v679, 96
    %v691 = vpop.permute.xlu0 %690
    %vm692 = vcmask 785408
    %v693 = vsel %vm692, %v687, %v689
    %v694 = vsel %vm692, %v689, %v691
    %s698 = scalar_lea.vmem [#allocation6], 24
    %699 = vst [vmem:[%s698] sm:$0xff] %v693
    %700 = vst [vmem:[%s698 + $0x8] sm:$0xff] %v694
    %701 = vst.msk [vmem:[%s698 + $0x10] sm:$0xff] %vm53, %v691
    // Predicated region
    $region22: #{tpu_custom_call.1} parent=1 // pred_check
      _
    $region23: #{tpu_custom_call.1} parent=1 // pred_check_branch
      %703 = sbr.rel (0) target = $region25
    $region24: #{tpu_custom_call.1} parent=1 // pred_region
      %s705 = ssub.s32 768, 768
      %706 = vsyncadd [#allocation5], %s705
      %s707 = sshll.u32 [#allocation6], 4
      %s708 = int_to_ptr.vmem [resolvable:$true] %s707
      %713 = dma.vmem_to_hbm [thread:$0]  %s708, 768, %s4, [#allocation5], 384, 384, 24
    $region25: #{tpu_custom_call.1} parent=1 // pred_fallthru
      _
    // Predicated region
    $region26: #{tpu_custom_call.1} parent=1 // pred_check
      _
    $region27: #{tpu_custom_call.1} parent=1 // pred_check_branch
      %715 = sbr.rel (0) target = $region29
    $region28: #{tpu_custom_call.1} parent=1 // pred_region
      %716 = dma.done [#allocation5], 768
    $region29: #{tpu_custom_call.1} parent=1 // pred_fallthru
      _
    %717 = vsyncpa [#allocation4], 1
    %718 = vsyncpa [#allocation5], 1

</llo_original>
